<compile_context>
chip_gen: v7x
topology: tpu7x:2x2x1
jax: 0.10.0
libtpu: 0.0.40
codegen_flags: <defaults>
</compile_context>

<pallas_src>
import math

import numpy as np
import jax
import jax.numpy as jnp
from jax import lax
from jax.experimental import pallas as pl
from jax.experimental.pallas import tpu as pltpu

# ---------------- config (small, consistent with the module) ----------------
CFG = dict(
    emb_dim=32,
    context_length=8,
    n_heads=4,
    drop_rate=0.0,   # dropout is identity at rate 0 / eval mode
    qvk_bias=False,
)
B = 2
S = CFG["context_length"]
E = CFG["emb_dim"]
H = CFG["n_heads"]
DH = E // H
HID = 4 * E
BHS = B * H * S          # 64 stacked (batch, head, token) rows
NEG = -1e30              # finite "minus infinity"; used wrapper-side only


def _layernorm(x, scale, shift, eps=1e-5):
    mean = jnp.mean(x, axis=-1, keepdims=True)
    xc = x - mean
    var = jnp.mean(xc * xc, axis=-1, keepdims=True)        # unbiased=False
    return scale * (xc * lax.rsqrt(var + eps)) + shift      # rsqrt -> EUP


def _gelu_tanh(x):
    c = math.sqrt(2.0 / math.pi)                            # Python float literal
    return 0.5 * x * (1.0 + jnp.tanh(c * (x + 0.044715 * x * x * x)))


def transformer_block_kernel(x_ref, wcat_ref, w2_ref, bvec_ref, cmat_ref,
                             rsum_ref, o_ref):
    # ---- unpack packed parameters (static slices of the refs) ----
    ln1s = bvec_ref[:, 0 * E:1 * E]
    ln1b = bvec_ref[:, 1 * E:2 * E]
    ln2s = bvec_ref[:, 2 * E:3 * E]
    ln2b = bvec_ref[:, 3 * E:4 * E]
    bo   = bvec_ref[:, 4 * E:5 * E]
    b2   = bvec_ref[:, 5 * E:6 * E]
    b1   = bvec_ref[:, 6 * E:6 * E + HID]

    wqkv = wcat_ref[:, 0:3 * E]              # (E, 3E)  Wq(pre-scaled) | Wk | Wv
    wo   = wcat_ref[:, 3 * E:4 * E]          # (E, E)
    w1   = wcat_ref[:, 4 * E:4 * E + HID]    # (E, HID)

    amask = cmat_ref[:, 0:BHS]               # (BHS, BHS) causal + block-diag additive mask
    hsel  = cmat_ref[:, BHS:BHS + E]         # (BHS, E)   0/1 head-select lane mask
    rsum  = rsum_ref[...]                    # (B*S, BHS) fold-heads-back matrix

    x = x_ref[...]                           # (B*S, E)
    skip1 = x

    # ---- LayerNorm 1 + fused QKV projection (attention scale folded into Wq) ----
    h = _layernorm(x, ln1s, ln1b)
    qkv = jnp.dot(h, wqkv, preferred_element_type=jnp.float32)        # (B*S, 3E)

    # ---- replicate each batch's S-row block H times -> (b, h, s)-ordered rows ----
    # (2 static sublane slices + 1 concat; no reshapes / transposes)
    rows = []
    for b in range(B):
        blk = qkv[b * S:(b + 1) * S, :]
        rows.extend([blk] * H)
    qkv_rep = jnp.concatenate(rows, axis=0)                           # (BHS, 3E)

    # head-expanded q/k/v: row (b,h,s) keeps only head h's lanes in q and v
    q = qkv_rep[:, 0:E] * hsel                                        # (BHS, E)
    k = qkv_rep[:, E:2 * E]                                           # (BHS, E)
    v = qkv_rep[:, 2 * E:3 * E] * hsel                                # (BHS, E)

    # ---- single stacked block-diagonal causal attention ----
    s_att = lax.dot_general(q, k, (((1,), (1,)), ((), ())),
                            preferred_element_type=jnp.float32)       # (BHS, BHS)
    s_att = s_att + amask                                             # off-block / non-causal -> -1e30
    m = jnp.max(s_att, axis=-1, keepdims=True)
    p = jnp.exp(s_att - m)
    p = p / jnp.sum(p, axis=-1, keepdims=True)                        # masked lanes underflow to 0
    ctx_exp = jnp.dot(p, v, preferred_element_type=jnp.float32)       # (BHS, E)
    ctx = jnp.dot(rsum, ctx_exp, preferred_element_type=jnp.float32)  # (B*S, E) head-concat layout

    attn_out = jnp.dot(ctx, wo, preferred_element_type=jnp.float32) + bo
    x = attn_out + skip1                     # residual (dropout rate 0 -> identity)
    skip2 = x

    # ---- LayerNorm 2 + FeedForward (GELU tanh) ----
    h = _layernorm(x, ln2s, ln2b)
    h = jnp.dot(h, w1, preferred_element_type=jnp.float32) + b1
    h = _gelu_tanh(h)
    h = jnp.dot(h, w2_ref[...], preferred_element_type=jnp.float32) + b2

    o_ref[...] = (h + skip2).astype(o_ref.dtype)


def _make_constant_mats():
    """Wrapper-side (numpy) attention mask, head-select mask and head-fold matrix."""
    r = np.arange(BHS)
    rb, rh, rs = r // (H * S), (r // S) % H, r % S
    same_block = (rb[:, None] == rb[None, :]) & (rh[:, None] == rh[None, :])
    causal = rs[None, :] <= rs[:, None]
    amask = np.where(same_block & causal, 0.0, NEG).astype(np.float32)        # (BHS, BHS)
    hsel = (rh[:, None] == (np.arange(E)[None, :] // DH)).astype(np.float32)  # (BHS, E)
    t = np.arange(B * S)
    rsum = ((t[:, None] // S == rb[None, :]) &
            (t[:, None] % S == rs[None, :])).astype(np.float32)               # (B*S, BHS)
    cmat = np.concatenate([amask, hsel], axis=1)                              # (BHS, BHS+E)
    return cmat, rsum


_CMAT, _RSUM = _make_constant_mats()


def transformer_block(x, params):
    (wq, wk, wv, wo, bo, w1, b1, w2, b2, ln1s, ln1b, ln2s, ln2b) = params

    # traced-once packing: fold 1/sqrt(DH) into Wq, fuse weights & biases
    inv_sqrt_dh = 1.0 / math.sqrt(DH)
    wcat = jnp.concatenate([wq * inv_sqrt_dh, wk, wv, wo, w1], axis=1)    # (E, 4E+HID)
    bvec = jnp.concatenate([ln1s, ln1b, ln2s, ln2b, bo, b2, b1], axis=1)  # (1, 6E+HID)

    x2d = x.reshape(B * S, E)
    cmat = jnp.asarray(_CMAT)
    rsum = jnp.asarray(_RSUM)

    out2d = pl.pallas_call(
        transformer_block_kernel,
        out_shape=jax.ShapeDtypeStruct((B * S, E), x.dtype),
        grid=(1,),                                               # single TC invocation
        in_specs=[
            pl.BlockSpec((B * S, E), lambda i: (0, 0)),          # x (flat tokens)
            pl.BlockSpec((E, 4 * E + HID), lambda i: (0, 0)),    # Wq|Wk|Wv|Wo|W1
            pl.BlockSpec((HID, E), lambda i: (0, 0)),            # W2
            pl.BlockSpec((1, 6 * E + HID), lambda i: (0, 0)),    # packed LN scales/shifts + biases
            pl.BlockSpec((BHS, BHS + E), lambda i: (0, 0)),      # attn mask | head-select mask
            pl.BlockSpec((B * S, BHS), lambda i: (0, 0)),        # fold-heads matrix
        ],
        out_specs=pl.BlockSpec((B * S, E), lambda i: (0, 0)),
        compiler_params=pltpu.CompilerParams(dimension_semantics=("arbitrary",)),
    )(x2d, wcat, w2, bvec, cmat, rsum)

    return out2d.reshape(B, S, E)


# ---------------- pure-JAX reference (for sanity check) ----------------
def reference(x, params):
    (wq, wk, wv, wo, bo, w1, b1, w2, b2, ln1s, ln1b, ln2s, ln2b) = params

    def ln(x, s, b, eps=1e-5):
        mean = jnp.mean(x, axis=-1, keepdims=True)
        var = jnp.mean((x - mean) ** 2, axis=-1, keepdims=True)
        return s * ((x - mean) / jnp.sqrt(var + eps)) + b

    skip = x
    h = ln(x, ln1s[0], ln1b[0])
    q = (h @ wq).reshape(B, S, H, DH).transpose(0, 2, 1, 3)
    k = (h @ wk).reshape(B, S, H, DH).transpose(0, 2, 1, 3)
    v = (h @ wv).reshape(B, S, H, DH).transpose(0, 2, 1, 3)
    sc = jnp.einsum("bhqd,bhkd->bhqk", q, k)
    mask = jnp.tril(jnp.ones((S, S), bool))
    sc = jnp.where(mask, sc, -jnp.inf) / math.sqrt(DH)
    w = jax.nn.softmax(sc, axis=-1)
    ctx = jnp.einsum("bhqk,bhkd->bhqd", w, v).transpose(0, 2, 1, 3).reshape(B, S, E)
    x = ctx @ wo + bo[0] + skip
    skip = x
    h = ln(x, ln2s[0], ln2b[0])
    h = _gelu_tanh(h @ w1 + b1[0]) @ w2 + b2[0]
    return h + skip


if __name__ == "__main__":
    key = jax.random.PRNGKey(0)
    ks = jax.random.split(key, 10)

    def lin_w(k, fan_in, fan_out):
        bound = 1.0 / math.sqrt(fan_in)
        return jax.random.uniform(k, (fan_in, fan_out), jnp.float32, -bound, bound)

    x = jax.random.normal(ks[0], (B, S, E), jnp.float32)

    wq = lin_w(ks[1], E, E)
    wk = lin_w(ks[2], E, E)
    wv = lin_w(ks[3], E, E)
    wo = lin_w(ks[4], E, E)
    bo = jax.random.uniform(ks[5], (1, E), jnp.float32, -1 / math.sqrt(E), 1 / math.sqrt(E))
    w1 = lin_w(ks[6], E, HID)
    b1 = jax.random.uniform(ks[7], (1, HID), jnp.float32, -1 / math.sqrt(E), 1 / math.sqrt(E))
    w2 = lin_w(ks[8], HID, E)
    b2 = jax.random.uniform(ks[9], (1, E), jnp.float32, -1 / math.sqrt(HID), 1 / math.sqrt(HID))
    ln1s = jnp.ones((1, E), jnp.float32)
    ln1b = jnp.zeros((1, E), jnp.float32)
    ln2s = jnp.ones((1, E), jnp.float32)
    ln2b = jnp.zeros((1, E), jnp.float32)

    params = (wq, wk, wv, wo, bo, w1, b1, w2, b2, ln1s, ln1b, ln2s, ln2b)

    out = transformer_block(x, params)
    out = jax.block_until_ready(out)

    ref = reference(x, params)
    assert out.shape == (B, S, E)
    # tolerance absorbs MXU f32 matmul pass differences vs. the XLA reference
    assert jnp.allclose(out, ref, atol=5e-3, rtol=5e-3), "mismatch vs JAX reference"

    print("KERNEL_OK")
</pallas_src>

<mosaic_0001>
module attributes {stable_mosaic.version = 11 : i64} {
  func.func @transformer_block_kernel(%arg0: i32, %arg1: memref<16x32xf32, #tpu.memory_space<vmem>>, %arg2: memref<32x256xf32, #tpu.memory_space<vmem>>, %arg3: memref<128x32xf32, #tpu.memory_space<vmem>>, %arg4: memref<1x320xf32, #tpu.memory_space<vmem>>, %arg5: memref<64x96xf32, #tpu.memory_space<vmem>>, %arg6: memref<16x64xf32, #tpu.memory_space<vmem>>, %arg7: memref<16x32xf32, #tpu.memory_space<vmem>>) attributes {dimension_semantics = [#tpu.dimension_semantics<arbitrary>], iteration_bounds = array<i64: 1>, scalar_prefetch = 0 : i64, scratch_operands = 0 : i64, tpu.core_type = #tpu.core_type<tc>, window_params = [{pipeline_mode = #tpu.pipeline_mode<synchronous>, transform_indices = @transform_0, window_bounds = array<i64: 16, 32>}, {pipeline_mode = #tpu.pipeline_mode<synchronous>, transform_indices = @transform_1, window_bounds = array<i64: 32, 256>}, {pipeline_mode = #tpu.pipeline_mode<synchronous>, transform_indices = @transform_2, window_bounds = array<i64: 128, 32>}, {pipeline_mode = #tpu.pipeline_mode<synchronous>, transform_indices = @transform_3, window_bounds = array<i64: 1, 320>}, {pipeline_mode = #tpu.pipeline_mode<synchronous>, transform_indices = @transform_4, window_bounds = array<i64: 64, 96>}, {pipeline_mode = #tpu.pipeline_mode<synchronous>, transform_indices = @transform_5, window_bounds = array<i64: 16, 64>}, {pipeline_mode = #tpu.pipeline_mode<synchronous>, transform_indices = @transform_6, window_bounds = array<i64: 16, 32>}]} {
    %c0 = arith.constant 0 : index
    %c0_0 = arith.constant 0 : index
    %0 = vector.load %arg4[%c0, %c0_0] : memref<1x320xf32, #tpu.memory_space<vmem>>, vector<1x32xf32>
    %c0_1 = arith.constant 0 : index
    %c32 = arith.constant 32 : index
    %1 = vector.load %arg4[%c0_1, %c32] : memref<1x320xf32, #tpu.memory_space<vmem>>, vector<1x32xf32>
    %c0_2 = arith.constant 0 : index
    %c64 = arith.constant 64 : index
    %2 = vector.load %arg4[%c0_2, %c64] : memref<1x320xf32, #tpu.memory_space<vmem>>, vector<1x32xf32>
    %c0_3 = arith.constant 0 : index
    %c96 = arith.constant 96 : index
    %3 = vector.load %arg4[%c0_3, %c96] : memref<1x320xf32, #tpu.memory_space<vmem>>, vector<1x32xf32>
    %c0_4 = arith.constant 0 : index
    %c128 = arith.constant 128 : index
    %4 = vector.load %arg4[%c0_4, %c128] : memref<1x320xf32, #tpu.memory_space<vmem>>, vector<1x32xf32>
    %c0_5 = arith.constant 0 : index
    %c160 = arith.constant 160 : index
    %5 = vector.load %arg4[%c0_5, %c160] : memref<1x320xf32, #tpu.memory_space<vmem>>, vector<1x32xf32>
    %c0_6 = arith.constant 0 : index
    %c192 = arith.constant 192 : index
    %6 = vector.load %arg4[%c0_6, %c192] : memref<1x320xf32, #tpu.memory_space<vmem>>, vector<1x128xf32>
    %c0_7 = arith.constant 0 : index
    %c0_8 = arith.constant 0 : index
    %7 = vector.load %arg2[%c0_7, %c0_8] : memref<32x256xf32, #tpu.memory_space<vmem>>, vector<32x96xf32>
    %c0_9 = arith.constant 0 : index
    %c96_10 = arith.constant 96 : index
    %8 = vector.load %arg2[%c0_9, %c96_10] : memref<32x256xf32, #tpu.memory_space<vmem>>, vector<32x32xf32>
    %c0_11 = arith.constant 0 : index
    %c128_12 = arith.constant 128 : index
    %9 = vector.load %arg2[%c0_11, %c128_12] : memref<32x256xf32, #tpu.memory_space<vmem>>, vector<32x128xf32>
    %c0_13 = arith.constant 0 : index
    %c0_14 = arith.constant 0 : index
    %10 = vector.load %arg5[%c0_13, %c0_14] : memref<64x96xf32, #tpu.memory_space<vmem>>, vector<64x64xf32>
    %c0_15 = arith.constant 0 : index
    %c64_16 = arith.constant 64 : index
    %11 = vector.load %arg5[%c0_15, %c64_16] : memref<64x96xf32, #tpu.memory_space<vmem>>, vector<64x32xf32>
    %c0_17 = arith.constant 0 : index
    %c0_18 = arith.constant 0 : index
    %12 = vector.load %arg6[%c0_17, %c0_18] : memref<16x64xf32, #tpu.memory_space<vmem>>, vector<16x64xf32>
    %c0_19 = arith.constant 0 : index
    %c0_20 = arith.constant 0 : index
    %13 = vector.load %arg1[%c0_19, %c0_20] : memref<16x32xf32, #tpu.memory_space<vmem>>, vector<16x32xf32>
    %cst = arith.constant dense<0.000000e+00> : vector<16xf32>
    %14 = vector.multi_reduction <add>, %13, %cst [1] : vector<16x32xf32> to vector<16xf32>
    %15 = vector.shape_cast %14 : vector<16xf32> to vector<16x1xf32>
    %cst_21 = arith.constant 3.200000e+01 : f32
    %16 = vector.broadcast %cst_21 : f32 to vector<16x1xf32>
    %17 = arith.divf %15, %16 : vector<16x1xf32>
    %18 = vector.broadcast %17 : vector<16x1xf32> to vector<16x32xf32>
    %19 = arith.subf %13, %18 : vector<16x32xf32>
    %20 = arith.mulf %19, %19 : vector<16x32xf32>
    %cst_22 = arith.constant dense<0.000000e+00> : vector<16xf32>
    %21 = vector.multi_reduction <add>, %20, %cst_22 [1] : vector<16x32xf32> to vector<16xf32>
    %22 = vector.shape_cast %21 : vector<16xf32> to vector<16x1xf32>
    %cst_23 = arith.constant 3.200000e+01 : f32
    %23 = vector.broadcast %cst_23 : f32 to vector<16x1xf32>
    %24 = arith.divf %22, %23 : vector<16x1xf32>
    %cst_24 = arith.constant 9.99999974E-6 : f32
    %25 = vector.broadcast %cst_24 : f32 to vector<16x1xf32>
    %26 = arith.addf %24, %25 : vector<16x1xf32>
    %27 = math.rsqrt %26 : vector<16x1xf32>
    %28 = vector.broadcast %27 : vector<16x1xf32> to vector<16x32xf32>
    %29 = arith.mulf %19, %28 : vector<16x32xf32>
    %30 = vector.broadcast %0 : vector<1x32xf32> to vector<16x32xf32>
    %31 = arith.mulf %30, %29 : vector<16x32xf32>
    %32 = vector.broadcast %1 : vector<1x32xf32> to vector<16x32xf32>
    %33 = arith.addf %31, %32 : vector<16x32xf32>
    %cst_25 = arith.constant dense<0.000000e+00> : vector<16x96xf32>
    %34 = tpu.matmul %33, %7, %cst_25 {dimension_numbers = #tpu.dot_dimension_numbers<[1], [0], [0], [1], [0, 0, 1, 1], [], []>} : vector<16x32xf32>, vector<32x96xf32>, vector<16x96xf32> -> vector<16x96xf32>
    %35 = vector.extract_strided_slice %34 {offsets = [0, 0], sizes = [8, 96], strides = [1, 1]} : vector<16x96xf32> to vector<8x96xf32>
    %36 = vector.extract_strided_slice %34 {offsets = [8, 0], sizes = [8, 96], strides = [1, 1]} : vector<16x96xf32> to vector<8x96xf32>
    %37 = tpu.concatenate %35, %35, %35, %35, %36, %36, %36, %36 in 0 : vector<8x96xf32>, vector<8x96xf32>, vector<8x96xf32>, vector<8x96xf32>, vector<8x96xf32>, vector<8x96xf32>, vector<8x96xf32>, vector<8x96xf32> -> vector<64x96xf32>
    %38 = vector.extract_strided_slice %37 {offsets = [0, 0], sizes = [64, 32], strides = [1, 1]} : vector<64x96xf32> to vector<64x32xf32>
    %39 = arith.mulf %38, %11 : vector<64x32xf32>
    %40 = vector.extract_strided_slice %37 {offsets = [0, 32], sizes = [64, 32], strides = [1, 1]} : vector<64x96xf32> to vector<64x32xf32>
    %41 = vector.extract_strided_slice %37 {offsets = [0, 64], sizes = [64, 32], strides = [1, 1]} : vector<64x96xf32> to vector<64x32xf32>
    %42 = arith.mulf %41, %11 : vector<64x32xf32>
    %cst_26 = arith.constant dense<0.000000e+00> : vector<64x64xf32>
    %43 = tpu.matmul %39, %40, %cst_26 {dimension_numbers = #tpu.dot_dimension_numbers<[1], [1], [0], [0], [0, 0, 1, 0], [], []>} : vector<64x32xf32>, vector<64x32xf32>, vector<64x64xf32> -> vector<64x64xf32>
    %44 = arith.addf %43, %10 : vector<64x64xf32>
    %cst_27 = arith.constant dense<0xFF800000> : vector<64xf32>
    %45 = vector.multi_reduction <maximumf>, %44, %cst_27 [1] : vector<64x64xf32> to vector<64xf32>
    %46 = vector.shape_cast %45 : vector<64xf32> to vector<64x1xf32>
    %47 = vector.broadcast %46 : vector<64x1xf32> to vector<64x64xf32>
    %48 = arith.subf %44, %47 : vector<64x64xf32>
    %49 = math.exp %48 : vector<64x64xf32>
    %cst_28 = arith.constant dense<0.000000e+00> : vector<64xf32>
    %50 = vector.multi_reduction <add>, %49, %cst_28 [1] : vector<64x64xf32> to vector<64xf32>
    %51 = vector.shape_cast %50 : vector<64xf32> to vector<64x1xf32>
    %52 = vector.broadcast %51 : vector<64x1xf32> to vector<64x64xf32>
    %53 = arith.divf %49, %52 : vector<64x64xf32>
    %cst_29 = arith.constant dense<0.000000e+00> : vector<64x32xf32>
    %54 = tpu.matmul %53, %42, %cst_29 {dimension_numbers = #tpu.dot_dimension_numbers<[1], [0], [0], [1], [0, 0, 1, 1], [], []>} : vector<64x64xf32>, vector<64x32xf32>, vector<64x32xf32> -> vector<64x32xf32>
    %cst_30 = arith.constant dense<0.000000e+00> : vector<16x32xf32>
    %55 = tpu.matmul %12, %54, %cst_30 {dimension_numbers = #tpu.dot_dimension_numbers<[1], [0], [0], [1], [0, 0, 1, 1], [], []>} : vector<16x64xf32>, vector<64x32xf32>, vector<16x32xf32> -> vector<16x32xf32>
    %cst_31 = arith.constant dense<0.000000e+00> : vector<16x32xf32>
    %56 = tpu.matmul %55, %8, %cst_31 {dimension_numbers = #tpu.dot_dimension_numbers<[1], [0], [0], [1], [0, 0, 1, 1], [], []>} : vector<16x32xf32>, vector<32x32xf32>, vector<16x32xf32> -> vector<16x32xf32>
    %57 = vector.broadcast %4 : vector<1x32xf32> to vector<16x32xf32>
    %58 = arith.addf %56, %57 : vector<16x32xf32>
    %59 = arith.addf %58, %13 : vector<16x32xf32>
    %cst_32 = arith.constant dense<0.000000e+00> : vector<16xf32>
    %60 = vector.multi_reduction <add>, %59, %cst_32 [1] : vector<16x32xf32> to vector<16xf32>
    %61 = vector.shape_cast %60 : vector<16xf32> to vector<16x1xf32>
    %cst_33 = arith.constant 3.200000e+01 : f32
    %62 = vector.broadcast %cst_33 : f32 to vector<16x1xf32>
    %63 = arith.divf %61, %62 : vector<16x1xf32>
    %64 = vector.broadcast %63 : vector<16x1xf32> to vector<16x32xf32>
    %65 = arith.subf %59, %64 : vector<16x32xf32>
    %66 = arith.mulf %65, %65 : vector<16x32xf32>
    %cst_34 = arith.constant dense<0.000000e+00> : vector<16xf32>
    %67 = vector.multi_reduction <add>, %66, %cst_34 [1] : vector<16x32xf32> to vector<16xf32>
    %68 = vector.shape_cast %67 : vector<16xf32> to vector<16x1xf32>
    %cst_35 = arith.constant 3.200000e+01 : f32
    %69 = vector.broadcast %cst_35 : f32 to vector<16x1xf32>
    %70 = arith.divf %68, %69 : vector<16x1xf32>
    %cst_36 = arith.constant 9.99999974E-6 : f32
    %71 = vector.broadcast %cst_36 : f32 to vector<16x1xf32>
    %72 = arith.addf %70, %71 : vector<16x1xf32>
    %73 = math.rsqrt %72 : vector<16x1xf32>
    %74 = vector.broadcast %73 : vector<16x1xf32> to vector<16x32xf32>
    %75 = arith.mulf %65, %74 : vector<16x32xf32>
    %76 = vector.broadcast %2 : vector<1x32xf32> to vector<16x32xf32>
    %77 = arith.mulf %76, %75 : vector<16x32xf32>
    %78 = vector.broadcast %3 : vector<1x32xf32> to vector<16x32xf32>
    %79 = arith.addf %77, %78 : vector<16x32xf32>
    %cst_37 = arith.constant dense<0.000000e+00> : vector<16x128xf32>
    %80 = tpu.matmul %79, %9, %cst_37 {dimension_numbers = #tpu.dot_dimension_numbers<[1], [0], [0], [1], [0, 0, 1, 1], [], []>} : vector<16x32xf32>, vector<32x128xf32>, vector<16x128xf32> -> vector<16x128xf32>
    %81 = vector.broadcast %6 : vector<1x128xf32> to vector<16x128xf32>
    %82 = arith.addf %80, %81 : vector<16x128xf32>
    %cst_38 = arith.constant 5.000000e-01 : f32
    %83 = vector.broadcast %cst_38 : f32 to vector<16x128xf32>
    %84 = arith.mulf %83, %82 : vector<16x128xf32>
    %cst_39 = arith.constant 4.471500e-02 : f32
    %85 = vector.broadcast %cst_39 : f32 to vector<16x128xf32>
    %86 = arith.mulf %85, %82 : vector<16x128xf32>
    %87 = arith.mulf %86, %82 : vector<16x128xf32>
    %88 = arith.mulf %87, %82 : vector<16x128xf32>
    %89 = arith.addf %82, %88 : vector<16x128xf32>
    %cst_40 = arith.constant 0.797884583 : f32
    %90 = vector.broadcast %cst_40 : f32 to vector<16x128xf32>
    %91 = arith.mulf %90, %89 : vector<16x128xf32>
    %92 = math.tanh %91 : vector<16x128xf32>
    %cst_41 = arith.constant 1.000000e+00 : f32
    %93 = vector.broadcast %cst_41 : f32 to vector<16x128xf32>
    %94 = arith.addf %93, %92 : vector<16x128xf32>
    %95 = arith.mulf %84, %94 : vector<16x128xf32>
    %c0_42 = arith.constant 0 : index
    %c0_43 = arith.constant 0 : index
    %96 = vector.load %arg3[%c0_42, %c0_43] : memref<128x32xf32, #tpu.memory_space<vmem>>, vector<128x32xf32>
    %cst_44 = arith.constant dense<0.000000e+00> : vector<16x32xf32>
    %97 = tpu.matmul %95, %96, %cst_44 {dimension_numbers = #tpu.dot_dimension_numbers<[1], [0], [0], [1], [0, 0, 1, 1], [], []>} : vector<16x128xf32>, vector<128x32xf32>, vector<16x32xf32> -> vector<16x32xf32>
    %98 = vector.broadcast %5 : vector<1x32xf32> to vector<16x32xf32>
    %99 = arith.addf %97, %98 : vector<16x32xf32>
    %100 = arith.addf %99, %59 : vector<16x32xf32>
    %c0_45 = arith.constant 0 : index
    %c0_46 = arith.constant 0 : index
    %101 = vector.load %arg7[%c0_45, %c0_46] : memref<16x32xf32, #tpu.memory_space<vmem>>, vector<16x32xf32>
    tpu.vector_store %arg7[%c0_45, %c0_46], %100 {strides = array<i32>} : memref<16x32xf32, #tpu.memory_space<vmem>>, vector<16x32xf32>,
    return
  }
  func.func @transform_0(%arg0: i32) -> (i32, i32) {
    %c0_i32 = arith.constant 0 : i32
    %c0_i32_0 = arith.constant 0 : i32
    %c0_i32_1 = arith.constant 0 : i32
    return %c0_i32, %c0_i32_0 : i32, i32
  }
  func.func @transform_1(%arg0: i32) -> (i32, i32) {
    %c0_i32 = arith.constant 0 : i32
    %c0_i32_0 = arith.constant 0 : i32
    %c0_i32_1 = arith.constant 0 : i32
    return %c0_i32, %c0_i32_0 : i32, i32
  }
  func.func @transform_2(%arg0: i32) -> (i32, i32) {
    %c0_i32 = arith.constant 0 : i32
    %c0_i32_0 = arith.constant 0 : i32
    %c0_i32_1 = arith.constant 0 : i32
    return %c0_i32, %c0_i32_0 : i32, i32
  }
  func.func @transform_3(%arg0: i32) -> (i32, i32) {
    %c0_i32 = arith.constant 0 : i32
    %c0_i32_0 = arith.constant 0 : i32
    %c0_i32_1 = arith.constant 0 : i32
    return %c0_i32, %c0_i32_0 : i32, i32
  }
  func.func @transform_4(%arg0: i32) -> (i32, i32) {
    %c0_i32 = arith.constant 0 : i32
    %c0_i32_0 = arith.constant 0 : i32
    %c0_i32_1 = arith.constant 0 : i32
    return %c0_i32, %c0_i32_0 : i32, i32
  }
  func.func @transform_5(%arg0: i32) -> (i32, i32) {
    %c0_i32 = arith.constant 0 : i32
    %c0_i32_0 = arith.constant 0 : i32
    %c0_i32_1 = arith.constant 0 : i32
    return %c0_i32, %c0_i32_0 : i32, i32
  }
  func.func @transform_6(%arg0: i32) -> (i32, i32) {
    %c0_i32 = arith.constant 0 : i32
    %c0_i32_0 = arith.constant 0 : i32
    %c0_i32_1 = arith.constant 0 : i32
    return %c0_i32, %c0_i32_0 : i32, i32
  }
}

</mosaic_0001>

<llo_original>
// kernel: tpu_custom_call.1
$region0: #{tpu_custom_call.1}
  #allocation0 [shape = 'u32[]', space=smem, size = 0x4, offset = 0x4, fixed_abs, tag = 'smem constant byte address 0x4 - core index']
  #allocation1 [shape = 'u32[144,128]{1,0:T(1,128)}', space=vmem, size = 0x12000, scoped, tag = 'internal scratch']
  %s0 = inlined_call_operand.vmem [shape: f32[16,32], index: 0, kind: input, shape index: {}]
  %s1 = inlined_call_operand.vmem [shape: f32[32,256], index: 1, kind: input, shape index: {}]
  %s2 = inlined_call_operand.vmem [shape: f32[128,32], index: 2, kind: input, shape index: {}]
  %s3 = inlined_call_operand.vmem [shape: f32[1,320], index: 3, kind: input, shape index: {}]
  %s4 = inlined_call_operand.vmem [shape: f32[64,96], index: 4, kind: input, shape index: {}]
  %s5 = inlined_call_operand.vmem [shape: f32[16,64], index: 5, kind: input, shape index: {}]
  %s6 = inlined_call_operand.hbm [shape: f32[16,32], index: 6, kind: output, shape index: {}]
  %s7 = sld [smem:[#allocation0]]
  $region34: #{tpu_custom_call.1} parent=0
    _
  %s9 = ssub.s32 1, %s7
  %s10 = scalar_select 0, %s9, %s7
  $region1: #{tpu_custom_call.1} parent=0
    #allocation2 [shape = 'u8[8192]{0}', space=vmem, size = 0x2000, scoped, tag = 'output window, operand 0, single buffered']
    #allocation3 [shape = 's32[1]{0}', space=sflag, size = 0x4, scoped, tag = 'scoped memory for tpu_custom_call.1']
    %11 = vsyncpa [#allocation3], 0
    // Predicated region
    $region2: #{tpu_custom_call.1} parent=1 // pred_check
      _
    $region3: #{tpu_custom_call.1} parent=1 // pred_check_branch
      %13 = sbr.rel (0) target = $region5
    $region4: #{tpu_custom_call.1} parent=1 // pred_region
      _
    $region5: #{tpu_custom_call.1} parent=1 // pred_fallthru
      _
    // Predicated region
    $region6: #{tpu_custom_call.1} parent=1 // pred_check
      _
    $region7: #{tpu_custom_call.1} parent=1 // pred_check_branch
      %15 = sbr.rel (0) target = $region9
    $region8: #{tpu_custom_call.1} parent=1 // pred_region
      _
    $region9: #{tpu_custom_call.1} parent=1 // pred_fallthru
      _
    // Predicated region
    $region10: #{tpu_custom_call.1} parent=1 // pred_check
      _
    $region11: #{tpu_custom_call.1} parent=1 // pred_check_branch
      %17 = sbr.rel (0) target = $region13
    $region12: #{tpu_custom_call.1} parent=1 // pred_region
      _
    $region13: #{tpu_custom_call.1} parent=1 // pred_fallthru
      _
    // Predicated region
    $region14: #{tpu_custom_call.1} parent=1 // pred_check
      _
    $region15: #{tpu_custom_call.1} parent=1 // pred_check_branch
      %19 = sbr.rel (0) target = $region17
    $region16: #{tpu_custom_call.1} parent=1 // pred_region
      _
    $region17: #{tpu_custom_call.1} parent=1 // pred_fallthru
      _
    // Predicated region
    $region18: #{tpu_custom_call.1} parent=1 // pred_check
      _
    $region19: #{tpu_custom_call.1} parent=1 // pred_check_branch
      %21 = sbr.rel (0) target = $region21
    $region20: #{tpu_custom_call.1} parent=1 // pred_region
      _
    $region21: #{tpu_custom_call.1} parent=1 // pred_fallthru
      _
    // Predicated region
    $region22: #{tpu_custom_call.1} parent=1 // pred_check
      _
    $region23: #{tpu_custom_call.1} parent=1 // pred_check_branch
      %23 = sbr.rel (0) target = $region25
    $region24: #{tpu_custom_call.1} parent=1 // pred_region
      _
    $region25: #{tpu_custom_call.1} parent=1 // pred_fallthru
      _
    %v24 = vld [vmem:[%s3] sm:$0x1]
    %v25 = vld [vmem:[%s3 + $0x1] sm:$0x1]
    %v26 = vld [vmem:[%s3 + $0x1] sm:$0x3]
    %v27 = vld [vmem:[%s1] sm:$0xff]
    %v28 = vld [vmem:[%s1 + $0x10] sm:$0xff]
    %v29 = vld [vmem:[%s1 + $0x20] sm:$0xff]
    %v30 = vld [vmem:[%s1 + $0x30] sm:$0xff]
    %v31 = vld [vmem:[%s1 + $0x8] sm:$0xff]
    %v32 = vld [vmem:[%s1 + $0x18] sm:$0xff]
    %v33 = vld [vmem:[%s1 + $0x28] sm:$0xff]
    %v34 = vld [vmem:[%s1 + $0x38] sm:$0xff]
    %v35 = vld [vmem:[%s4] sm:$0xff]
    %v36 = vld [vmem:[%s4 + $0x8] sm:$0xff]
    %v37 = vld [vmem:[%s4 + $0x10] sm:$0xff]
    %v38 = vld [vmem:[%s4 + $0x18] sm:$0xff]
    %v39 = vld [vmem:[%s4 + $0x20] sm:$0xff]
    %v40 = vld [vmem:[%s4 + $0x28] sm:$0xff]
    %v41 = vld [vmem:[%s4 + $0x30] sm:$0xff]
    %v42 = vld [vmem:[%s4 + $0x38] sm:$0xff]
    %v43 = vld [vmem:[%s5] sm:$0xff]
    %v44 = vld [vmem:[%s5 + $0x8] sm:$0xff]
    %v45 = vld [vmem:[%s0] sm:$0xff]
    %v46 = vld [vmem:[%s0 + $0x8] sm:$0xff]
    %vm47 = vcmask 261120
    %v48 = vsel %vm47, %v45, 0.0
    %49 = vadd.xlane.f32.xlu0 %v48
    %v50 = vpop.xlane.xlu0 %49
    %v51 = vsel %vm47, %v46, 0.0
    %52 = vadd.xlane.f32.xlu0 %v51
    %v53 = vpop.xlane.xlu0 %52
    %v54 = vrcp.pop 32.0
    %v55 = vmul.f32 %v50, %v54
    %v56 = vmul.f32 %v53, %v54
    %v57 = vsub.f32 %v45, %v55
    %v58 = vsub.f32 %v46, %v56
    %v59 = vmul.f32 %v57, %v57
    %v60 = vmul.f32 %v58, %v58
    %v61 = vsel %vm47, %v59, 0.0
    %62 = vadd.xlane.f32.xlu0 %v61
    %v63 = vpop.xlane.xlu0 %62
    %v64 = vsel %vm47, %v60, 0.0
    %65 = vadd.xlane.f32.xlu0 %v64
    %v66 = vpop.xlane.xlu0 %65
    %v67 = vmul.f32 %v63, %v54
    %v68 = vmul.f32 %v66, %v54
    %v69 = vadd.f32 %v67, 1e-05
    %v70 = vadd.f32 %v68, 1e-05
    %v71 = vrsqrt.pop %v69
    %v72 = vrsqrt.pop %v70
    %v73 = vmul.f32 %v57, %v71
    %v74 = vmul.f32 %v58, %v72
    %v76 = vlaneseq
    %v77 = vshrl.u32 %v76, 7
    %v78 = vsub.s32 0, %v77
    %v79 = vrot.slane %v24, %v78
    %v81 = vmul.f32 %v79, %v73
    %v82 = vmul.f32 %v79, %v74
    %83 = vrot.lane.b32.xlu0 %v79, 96
    %v84 = vpop.permute.xlu0 %83
    %v86 = vadd.f32 %v81, %v84
    %v87 = vadd.f32 %v82, %v84
    %v89 = vsel %vm47, %v86, 0
    %v92 = vsel %vm47, %v87, 0
    %94 = vmatprep.subr.mxu0 0.0
    %95 = vmatpush1.msra.mxu0 %v27
    %96 = vmatprep.subr.mxu0 0.0
    %97 = vmatpush1.msra.mxu0 %v28
    %98 = vmatprep.subr.mxu0 0.0
    %99 = vmatpush1.msra.mxu0 %v29
    %100 = vmatprep.subr.mxu0 0.0
    %101 = vmatpush1.msra.mxu0 %v30
    %102 = vmatprep.subr.mxu0 0.0
    %103 = vmatpush1.msra.mxu0 0.0
    %104 = vmatprep.subr.mxu0 0.0
    %105 = vmatpush1.msra.mxu0 0.0
    %106 = vmatprep.subr.mxu0 0.0
    %107 = vmatpush1.msra.mxu0 0.0
    %108 = vmatprep.subr.mxu0 0.0
    %109 = vmatpush1.msra.mxu0 0.0
    %110 = vmatprep.subr.mxu0 0.0
    %111 = vmatpush1.msra.mxu0 0.0
    %112 = vmatprep.subr.mxu0 0.0
    %113 = vmatpush1.msra.mxu0 0.0
    %114 = vmatprep.subr.mxu0 0.0
    %115 = vmatpush1.msra.mxu0 0.0
    %116 = vmatprep.subr.mxu0 0.0
    %117 = vmatpush1.msra.mxu0 0.0
    %118 = vmatprep.subr.mxu0 0.0
    %119 = vmatpush1.msra.mxu0 0.0
    %120 = vmatprep.subr.mxu0 0.0
    %121 = vmatpush1.msra.mxu0 0.0
    %122 = vmatprep.subr.mxu0 0.0
    %123 = vmatpush1.msra.mxu0 0.0
    %124 = vmatprep.subr.mxu0 0.0
    %125 = vmatpush1.msra.mxu0 0.0
    %126 = vmatprep.subr.mxu0 0.0
    %127 = vmatpush1.msra.mxu0 0.0
    %128 = vmatprep.subr.mxu0 0.0
    %129 = vmatpush1.msra.mxu0 0.0
    %130 = vmatprep.subr.mxu0 0.0
    %131 = vmatpush1.msra.mxu0 0.0
    %132 = vmatprep.subr.mxu0 0.0
    %133 = vmatpush1.msra.mxu0 0.0
    %134 = vmatprep.subr.mxu0 0.0
    %135 = vmatpush1.msra.mxu0 0.0
    %136 = vmatprep.subr.mxu0 0.0
    %137 = vmatpush1.msra.mxu0 0.0
    %138 = vmatprep.subr.mxu0 0.0
    %139 = vmatpush1.msra.mxu0 0.0
    %140 = vmatprep.subr.mxu0 0.0
    %141 = vmatpush1.msra.mxu0 0.0
    %142 = vmatprep.subr.mxu0 0.0
    %143 = vmatpush1.msra.mxu0 0.0
    %144 = vmatprep.subr.mxu0 0.0
    %145 = vmatpush1.msra.mxu0 0.0
    %146 = vmatprep.subr.mxu0 0.0
    %147 = vmatpush1.msra.mxu0 0.0
    %148 = vmatprep.subr.mxu0 0.0
    %149 = vmatpush1.msra.mxu0 0.0
    %150 = vmatprep.subr.mxu0 0.0
    %151 = vmatpush1.msra.mxu0 0.0
    %152 = vmatprep.subr.mxu0 0.0
    %153 = vmatpush1.msra.mxu0 0.0
    %154 = vmatprep.subr.mxu0 0.0
    %155 = vmatpush1.msra.mxu0 0.0
    %156 = vmatprep.subr.mxu0 0.0
    %157 = vmatpush1.msra.mxu0 0.0
    %158 = vmatprep.mubr.f32.mxu0 0.0
    %159 = vmatmul.mubr.f32.gmra.mrb[0].mxu0 %v89
    %v160 = vpop.f32.mrb[0].mxu0
    %v161 = vadd.f32 0.0, %v160
    %v162 = vpop.f32.mrb[0].mxu0
    %163 = vmatprep.mubr.f32.mxu0 0.0
    %164 = vmatmul.mubr.f32.gmra.mrb[0].mxu0 %v92
    %v165 = vpop.f32.mrb[0].mxu0
    %v166 = vadd.f32 0.0, %v165
    %v167 = vpop.f32.mrb[0].mxu0
    %168 = vdwg.mxu0
    %177 = vrot.lane.b32.xlu0 %v35, 64
    %v178 = vpop.permute.xlu0 %177
    %179 = vrot.lane.b32.xlu0 %v36, 64
    %v180 = vpop.permute.xlu0 %179
    %181 = vrot.lane.b32.xlu0 %v37, 64
    %v182 = vpop.permute.xlu0 %181
    %183 = vrot.lane.b32.xlu0 %v38, 64
    %v184 = vpop.permute.xlu0 %183
    %185 = vrot.lane.b32.xlu0 %v39, 64
    %v186 = vpop.permute.xlu0 %185
    %187 = vrot.lane.b32.xlu0 %v40, 64
    %v188 = vpop.permute.xlu0 %187
    %189 = vrot.lane.b32.xlu0 %v41, 64
    %v190 = vpop.permute.xlu0 %189
    %191 = vrot.lane.b32.xlu0 %v42, 64
    %v192 = vpop.permute.xlu0 %191
    %v201 = vmul.f32 %v161, %v178
    %v202 = vmul.f32 %v161, %v180
    %v203 = vmul.f32 %v161, %v182
    %v204 = vmul.f32 %v161, %v184
    %v205 = vmul.f32 %v166, %v186
    %v206 = vmul.f32 %v166, %v188
    %v207 = vmul.f32 %v166, %v190
    %v208 = vmul.f32 %v166, %v192
    %v209 = vmul.f32 %v161, %v35
    %v210 = vmul.f32 %v161, %v36
    %v211 = vmul.f32 %v161, %v37
    %v212 = vmul.f32 %v161, %v38
    %v213 = vmul.f32 %v166, %v39
    %v214 = vmul.f32 %v166, %v40
    %v215 = vmul.f32 %v166, %v41
    %v216 = vmul.f32 %v166, %v42
    %219 = vrot.lane.b32.xlu0 %v161, 96
    %v220 = vpop.permute.xlu0 %219
    %221 = vrot.lane.b32.xlu0 %v166, 96
    %v222 = vpop.permute.xlu0 %221
    %v224 = vsel %vm47, %v201, 0
    %v227 = vsel %vm47, %v202, 0
    %v230 = vsel %vm47, %v203, 0
    %v233 = vsel %vm47, %v204, 0
    %v236 = vsel %vm47, %v205, 0
    %v239 = vsel %vm47, %v206, 0
    %v242 = vsel %vm47, %v207, 0
    %v245 = vsel %vm47, %v208, 0
    %v247 = vsel %vm47, %v220, 0
    %v249 = vsel %vm47, %v222, 0
    %251 = vmatprep.subr.mxu0 0.0
    %252 = vmatpush1.xpose.msra.mxu0 %v247
    %253 = vmatprep.subr.mxu0 0.0
    %254 = vmatpush1.xpose.msra.mxu0 %v247
    %255 = vmatprep.subr.mxu0 0.0
    %256 = vmatpush1.xpose.msra.mxu0 %v247
    %257 = vmatprep.subr.mxu0 0.0
    %258 = vmatpush1.xpose.msra.mxu0 %v247
    %259 = vmatprep.subr.mxu0 0.0
    %260 = vmatpush1.xpose.msra.mxu0 %v249
    %261 = vmatprep.subr.mxu0 0.0
    %262 = vmatpush1.xpose.msra.mxu0 %v249
    %263 = vmatprep.subr.mxu0 0.0
    %264 = vmatpush1.xpose.msra.mxu0 %v249
    %265 = vmatprep.subr.mxu0 0.0
    %266 = vmatpush1.xpose.msra.mxu0 %v249
    %267 = vmatprep.subr.mxu0 0.0
    %268 = vmatpush1.xpose.msra.mxu0 0.0
    %269 = vmatprep.subr.mxu0 0.0
    %270 = vmatpush1.xpose.msra.mxu0 0.0
    %271 = vmatprep.subr.mxu0 0.0
    %272 = vmatpush1.xpose.msra.mxu0 0.0
    %273 = vmatprep.subr.mxu0 0.0
    %274 = vmatpush1.xpose.msra.mxu0 0.0
    %275 = vmatprep.subr.mxu0 0.0
    %276 = vmatpush1.xpose.msra.mxu0 0.0
    %277 = vmatprep.subr.mxu0 0.0
    %278 = vmatpush1.xpose.msra.mxu0 0.0
    %279 = vmatprep.subr.mxu0 0.0
    %280 = vmatpush1.xpose.msra.mxu0 0.0
    %281 = vmatprep.subr.mxu0 0.0
    %282 = vmatpush1.xpose.msra.mxu0 0.0
    %283 = vmatprep.subr.mxu0 0.0
    %284 = vmatpush1.xpose.msra.mxu0 0.0
    %285 = vmatprep.subr.mxu0 0.0
    %286 = vmatpush1.xpose.msra.mxu0 0.0
    %287 = vmatprep.subr.mxu0 0.0
    %288 = vmatpush1.xpose.msra.mxu0 0.0
    %289 = vmatprep.subr.mxu0 0.0
    %290 = vmatpush1.xpose.msra.mxu0 0.0
    %291 = vmatprep.subr.mxu0 0.0
    %292 = vmatpush1.xpose.msra.mxu0 0.0
    %293 = vmatprep.subr.mxu0 0.0
    %294 = vmatpush1.xpose.msra.mxu0 0.0
    %295 = vmatprep.subr.mxu0 0.0
    %296 = vmatpush1.xpose.msra.mxu0 0.0
    %297 = vmatprep.subr.mxu0 0.0
    %298 = vmatpush1.xpose.msra.mxu0 0.0
    %299 = vmatprep.subr.mxu0 0.0
    %300 = vmatpush1.xpose.msra.mxu0 0.0
    %301 = vmatprep.subr.mxu0 0.0
    %302 = vmatpush1.xpose.msra.mxu0 0.0
    %303 = vmatprep.subr.mxu0 0.0
    %304 = vmatpush1.xpose.msra.mxu0 0.0
    %305 = vmatprep.subr.mxu0 0.0
    %306 = vmatpush1.xpose.msra.mxu0 0.0
    %307 = vmatprep.subr.mxu0 0.0
    %308 = vmatpush1.xpose.msra.mxu0 0.0
    %309 = vmatprep.subr.mxu0 0.0
    %310 = vmatpush1.xpose.msra.mxu0 0.0
    %311 = vmatprep.subr.mxu0 0.0
    %312 = vmatpush1.xpose.msra.mxu0 0.0
    %313 = vmatprep.subr.mxu0 0.0
    %314 = vmatpush1.xpose.msra.mxu0 0.0
    %315 = vmatprep.mubr.f32.mxu0 0.0
    %316 = vmatmul.mubr.f32.gmra.mrb[0].mxu0 %v224
    %v317 = vpop.f32.mrb[0].mxu0
    %v318 = vadd.f32 %v35, %v317
    %v319 = vpop.f32.mrb[0].mxu0
    %320 = vmatprep.mubr.f32.mxu0 0.0
    %321 = vmatmul.mubr.f32.gmra.mrb[0].mxu0 %v227
    %v322 = vpop.f32.mrb[0].mxu0
    %v323 = vadd.f32 %v36, %v322
    %v324 = vpop.f32.mrb[0].mxu0
    %325 = vmatprep.mubr.f32.mxu0 0.0
    %326 = vmatmul.mubr.f32.gmra.mrb[0].mxu0 %v230
    %v327 = vpop.f32.mrb[0].mxu0
    %v328 = vadd.f32 %v37, %v327
    %v329 = vpop.f32.mrb[0].mxu0
    %330 = vmatprep.mubr.f32.mxu0 0.0
    %331 = vmatmul.mubr.f32.gmra.mrb[0].mxu0 %v233
    %v332 = vpop.f32.mrb[0].mxu0
    %v333 = vadd.f32 %v38, %v332
    %v334 = vpop.f32.mrb[0].mxu0
    %335 = vmatprep.mubr.f32.mxu0 0.0
    %336 = vmatmul.mubr.f32.gmra.mrb[0].mxu0 %v236
    %v337 = vpop.f32.mrb[0].mxu0
    %v338 = vadd.f32 %v39, %v337
    %v339 = vpop.f32.mrb[0].mxu0
    %340 = vmatprep.mubr.f32.mxu0 0.0
    %341 = vmatmul.mubr.f32.gmra.mrb[0].mxu0 %v239
    %v342 = vpop.f32.mrb[0].mxu0
    %v343 = vadd.f32 %v40, %v342
    %v344 = vpop.f32.mrb[0].mxu0
    %345 = vmatprep.mubr.f32.mxu0 0.0
    %346 = vmatmul.mubr.f32.gmra.mrb[0].mxu0 %v242
    %v347 = vpop.f32.mrb[0].mxu0
    %v348 = vadd.f32 %v41, %v347
    %v349 = vpop.f32.mrb[0].mxu0
    %350 = vmatprep.mubr.f32.mxu0 0.0
    %351 = vmatmul.mubr.f32.gmra.mrb[0].mxu0 %v245
    %v352 = vpop.f32.mrb[0].mxu0
    %v353 = vadd.f32 %v42, %v352
    %v354 = vpop.f32.mrb[0].mxu0
    %355 = vdwg.mxu0
    %vm356 = vcmask 523264
    %v357 = vsel %vm356, %v318, -inf
    %358 = vmax.xlane.f32.xlu0 %v357
    %v359 = vpop.xlane.xlu0 %358
    %v360 = vsel %vm356, %v323, -inf
    %361 = vmax.xlane.f32.xlu0 %v360
    %v362 = vpop.xlane.xlu0 %361
    %v363 = vsel %vm356, %v328, -inf
    %364 = vmax.xlane.f32.xlu0 %v363
    %v365 = vpop.xlane.xlu0 %364
    %v366 = vsel %vm356, %v333, -inf
    %367 = vmax.xlane.f32.xlu0 %v366
    %v368 = vpop.xlane.xlu0 %367
    %v369 = vsel %vm356, %v338, -inf
    %370 = vmax.xlane.f32.xlu0 %v369
    %v371 = vpop.xlane.xlu0 %370
    %v372 = vsel %vm356, %v343, -inf
    %373 = vmax.xlane.f32.xlu0 %v372
    %v374 = vpop.xlane.xlu0 %373
    %v375 = vsel %vm356, %v348, -inf
    %376 = vmax.xlane.f32.xlu0 %v375
    %v377 = vpop.xlane.xlu0 %376
    %v378 = vsel %vm356, %v353, -inf
    %379 = vmax.xlane.f32.xlu0 %v378
    %v380 = vpop.xlane.xlu0 %379
    %v381 = vsub.f32 %v318, %v359
    %v382 = vsub.f32 %v323, %v362
    %v383 = vsub.f32 %v328, %v365
    %v384 = vsub.f32 %v333, %v368
    %v385 = vsub.f32 %v338, %v371
    %v386 = vsub.f32 %v343, %v374
    %v387 = vsub.f32 %v348, %v377
    %v388 = vsub.f32 %v353, %v380
    %v389 = vmul.f32 %v381, 1.442695
    %v390 = vpow.pop %v389
    %v391 = vmul.f32 %v382, 1.442695
    %v392 = vpow.pop %v391
    %v393 = vmul.f32 %v383, 1.442695
    %v394 = vpow.pop %v393
    %v395 = vmul.f32 %v384, 1.442695
    %v396 = vpow.pop %v395
    %v397 = vmul.f32 %v385, 1.442695
    %v398 = vpow.pop %v397
    %v399 = vmul.f32 %v386, 1.442695
    %v400 = vpow.pop %v399
    %v401 = vmul.f32 %v387, 1.442695
    %v402 = vpow.pop %v401
    %v403 = vmul.f32 %v388, 1.442695
    %v404 = vpow.pop %v403
    %v405 = vsel %vm356, %v390, 0.0
    %406 = vadd.xlane.f32.xlu0 %v405
    %v407 = vpop.xlane.xlu0 %406
    %v408 = vsel %vm356, %v392, 0.0
    %409 = vadd.xlane.f32.xlu0 %v408
    %v410 = vpop.xlane.xlu0 %409
    %v411 = vsel %vm356, %v394, 0.0
    %412 = vadd.xlane.f32.xlu0 %v411
    %v413 = vpop.xlane.xlu0 %412
    %v414 = vsel %vm356, %v396, 0.0
    %415 = vadd.xlane.f32.xlu0 %v414
    %v416 = vpop.xlane.xlu0 %415
    %v417 = vsel %vm356, %v398, 0.0
    %418 = vadd.xlane.f32.xlu0 %v417
    %v419 = vpop.xlane.xlu0 %418
    %v420 = vsel %vm356, %v400, 0.0
    %421 = vadd.xlane.f32.xlu0 %v420
    %v422 = vpop.xlane.xlu0 %421
    %v423 = vsel %vm356, %v402, 0.0
    %424 = vadd.xlane.f32.xlu0 %v423
    %v425 = vpop.xlane.xlu0 %424
    %v426 = vsel %vm356, %v404, 0.0
    %427 = vadd.xlane.f32.xlu0 %v426
    %v428 = vpop.xlane.xlu0 %427
    %v429 = vrcp.pop %v407
    %v430 = vmul.f32 %v390, %v429
    %v431 = vrcp.pop %v410
    %v432 = vmul.f32 %v392, %v431
    %v433 = vrcp.pop %v413
    %v434 = vmul.f32 %v394, %v433
    %v435 = vrcp.pop %v416
    %v436 = vmul.f32 %v396, %v435
    %v437 = vrcp.pop %v419
    %v438 = vmul.f32 %v398, %v437
    %v439 = vrcp.pop %v422
    %v440 = vmul.f32 %v400, %v439
    %v441 = vrcp.pop %v425
    %v442 = vmul.f32 %v402, %v441
    %v443 = vrcp.pop %v428
    %v444 = vmul.f32 %v404, %v443
    %453 = vrot.lane.b32.xlu0 %v209, 64
    %v454 = vpop.permute.xlu0 %453
    %455 = vrot.lane.b32.xlu0 %v210, 64
    %v456 = vpop.permute.xlu0 %455
    %457 = vrot.lane.b32.xlu0 %v211, 64
    %v458 = vpop.permute.xlu0 %457
    %459 = vrot.lane.b32.xlu0 %v212, 64
    %v460 = vpop.permute.xlu0 %459
    %461 = vrot.lane.b32.xlu0 %v213, 64
    %v462 = vpop.permute.xlu0 %461
    %463 = vrot.lane.b32.xlu0 %v214, 64
    %v464 = vpop.permute.xlu0 %463
    %465 = vrot.lane.b32.xlu0 %v215, 64
    %v466 = vpop.permute.xlu0 %465
    %467 = vrot.lane.b32.xlu0 %v216, 64
    %v468 = vpop.permute.xlu0 %467
    %v478 = vsel %vm356, %v430, 0
    %v481 = vsel %vm356, %v432, 0
    %v484 = vsel %vm356, %v434, 0
    %v487 = vsel %vm356, %v436, 0
    %v490 = vsel %vm356, %v438, 0
    %v493 = vsel %vm356, %v440, 0
    %v496 = vsel %vm356, %v442, 0
    %v499 = vsel %vm356, %v444, 0
    %501 = vmatprep.subr.mxu0 0.0
    %502 = vmatpush1.msra.mxu0 %v454
    %503 = vmatprep.subr.mxu0 0.0
    %504 = vmatpush1.msra.mxu0 %v456
    %505 = vmatprep.subr.mxu0 0.0
    %506 = vmatpush1.msra.mxu0 %v458
    %507 = vmatprep.subr.mxu0 0.0
    %508 = vmatpush1.msra.mxu0 %v460
    %509 = vmatprep.subr.mxu0 0.0
    %510 = vmatpush1.msra.mxu0 %v462
    %511 = vmatprep.subr.mxu0 0.0
    %512 = vmatpush1.msra.mxu0 %v464
    %513 = vmatprep.subr.mxu0 0.0
    %514 = vmatpush1.msra.mxu0 %v466
    %515 = vmatprep.subr.mxu0 0.0
    %516 = vmatpush1.msra.mxu0 %v468
    %517 = vmatprep.subr.mxu0 0.0
    %518 = vmatpush1.msra.mxu0 0.0
    %519 = vmatprep.subr.mxu0 0.0
    %520 = vmatpush1.msra.mxu0 0.0
    %521 = vmatprep.subr.mxu0 0.0
    %522 = vmatpush1.msra.mxu0 0.0
    %523 = vmatprep.subr.mxu0 0.0
    %524 = vmatpush1.msra.mxu0 0.0
    %525 = vmatprep.subr.mxu0 0.0
    %526 = vmatpush1.msra.mxu0 0.0
    %527 = vmatprep.subr.mxu0 0.0
    %528 = vmatpush1.msra.mxu0 0.0
    %529 = vmatprep.subr.mxu0 0.0
    %530 = vmatpush1.msra.mxu0 0.0
    %531 = vmatprep.subr.mxu0 0.0
    %532 = vmatpush1.msra.mxu0 0.0
    %533 = vmatprep.subr.mxu0 0.0
    %534 = vmatpush1.msra.mxu0 0.0
    %535 = vmatprep.subr.mxu0 0.0
    %536 = vmatpush1.msra.mxu0 0.0
    %537 = vmatprep.subr.mxu0 0.0
    %538 = vmatpush1.msra.mxu0 0.0
    %539 = vmatprep.subr.mxu0 0.0
    %540 = vmatpush1.msra.mxu0 0.0
    %541 = vmatprep.subr.mxu0 0.0
    %542 = vmatpush1.msra.mxu0 0.0
    %543 = vmatprep.subr.mxu0 0.0
    %544 = vmatpush1.msra.mxu0 0.0
    %545 = vmatprep.subr.mxu0 0.0
    %546 = vmatpush1.msra.mxu0 0.0
    %547 = vmatprep.subr.mxu0 0.0
    %548 = vmatpush1.msra.mxu0 0.0
    %549 = vmatprep.subr.mxu0 0.0
    %550 = vmatpush1.msra.mxu0 0.0
    %551 = vmatprep.subr.mxu0 0.0
    %552 = vmatpush1.msra.mxu0 0.0
    %553 = vmatprep.subr.mxu0 0.0
    %554 = vmatpush1.msra.mxu0 0.0
    %555 = vmatprep.subr.mxu0 0.0
    %556 = vmatpush1.msra.mxu0 0.0
    %557 = vmatprep.subr.mxu0 0.0
    %558 = vmatpush1.msra.mxu0 0.0
    %559 = vmatprep.subr.mxu0 0.0
    %560 = vmatpush1.msra.mxu0 0.0
    %561 = vmatprep.subr.mxu0 0.0
    %562 = vmatpush1.msra.mxu0 0.0
    %563 = vmatprep.subr.mxu0 0.0
    %564 = vmatpush1.msra.mxu0 0.0
    %565 = vmatprep.mubr.f32.mxu0 0.0
    %566 = vmatmul.mubr.f32.gmra.mrb[0].mxu0 %v478
    %v567 = vpop.f32.mrb[0].mxu0
    %v568 = vadd.f32 0.0, %v567
    %v569 = vpop.f32.mrb[0].mxu0
    %570 = vmatprep.mubr.f32.mxu0 0.0
    %571 = vmatmul.mubr.f32.gmra.mrb[0].mxu0 %v481
    %v572 = vpop.f32.mrb[0].mxu0
    %v573 = vadd.f32 0.0, %v572
    %v574 = vpop.f32.mrb[0].mxu0
    %575 = vmatprep.mubr.f32.mxu0 0.0
    %576 = vmatmul.mubr.f32.gmra.mrb[0].mxu0 %v484
    %v577 = vpop.f32.mrb[0].mxu0
    %v578 = vadd.f32 0.0, %v577
    %v579 = vpop.f32.mrb[0].mxu0
    %580 = vmatprep.mubr.f32.mxu0 0.0
    %581 = vmatmul.mubr.f32.gmra.mrb[0].mxu0 %v487
    %v582 = vpop.f32.mrb[0].mxu0
    %v583 = vadd.f32 0.0, %v582
    %v584 = vpop.f32.mrb[0].mxu0
    %585 = vmatprep.mubr.f32.mxu0 0.0
    %586 = vmatmul.mubr.f32.gmra.mrb[0].mxu0 %v490
    %v587 = vpop.f32.mrb[0].mxu0
    %v588 = vadd.f32 0.0, %v587
    %v589 = vpop.f32.mrb[0].mxu0
    %590 = vmatprep.mubr.f32.mxu0 0.0
    %591 = vmatmul.mubr.f32.gmra.mrb[0].mxu0 %v493
    %v592 = vpop.f32.mrb[0].mxu0
    %v593 = vadd.f32 0.0, %v592
    %v594 = vpop.f32.mrb[0].mxu0
    %595 = vmatprep.mubr.f32.mxu0 0.0
    %596 = vmatmul.mubr.f32.gmra.mrb[0].mxu0 %v496
    %v597 = vpop.f32.mrb[0].mxu0
    %v598 = vadd.f32 0.0, %v597
    %v599 = vpop.f32.mrb[0].mxu0
    %600 = vmatprep.mubr.f32.mxu0 0.0
    %601 = vmatmul.mubr.f32.gmra.mrb[0].mxu0 %v499
    %v602 = vpop.f32.mrb[0].mxu0
    %v603 = vadd.f32 0.0, %v602
    %v604 = vpop.f32.mrb[0].mxu0
    %605 = vdwg.mxu0
    %v607 = vsel %vm356, %v43, 0
    %v610 = vsel %vm356, %v44, 0
    %612 = vmatprep.subr.mxu0 0.0
    %613 = vmatpush1.msra.mxu0 %v568
    %614 = vmatprep.subr.mxu0 0.0
    %615 = vmatpush1.msra.mxu0 %v573
    %616 = vmatprep.subr.mxu0 0.0
    %617 = vmatpush1.msra.mxu0 %v578
    %618 = vmatprep.subr.mxu0 0.0
    %619 = vmatpush1.msra.mxu0 %v583
    %620 = vmatprep.subr.mxu0 0.0
    %621 = vmatpush1.msra.mxu0 %v588
    %622 = vmatprep.subr.mxu0 0.0
    %623 = vmatpush1.msra.mxu0 %v593
    %624 = vmatprep.subr.mxu0 0.0
    %625 = vmatpush1.msra.mxu0 %v598
    %626 = vmatprep.subr.mxu0 0.0
    %627 = vmatpush1.msra.mxu0 %v603
    %628 = vmatprep.subr.mxu0 0.0
    %629 = vmatpush1.msra.mxu0 0.0
    %630 = vmatprep.subr.mxu0 0.0
    %631 = vmatpush1.msra.mxu0 0.0
    %632 = vmatprep.subr.mxu0 0.0
    %633 = vmatpush1.msra.mxu0 0.0
    %634 = vmatprep.subr.mxu0 0.0
    %635 = vmatpush1.msra.mxu0 0.0
    %636 = vmatprep.subr.mxu0 0.0
    %637 = vmatpush1.msra.mxu0 0.0
    %638 = vmatprep.subr.mxu0 0.0
    %639 = vmatpush1.msra.mxu0 0.0
    %640 = vmatprep.subr.mxu0 0.0
    %641 = vmatpush1.msra.mxu0 0.0
    %642 = vmatprep.subr.mxu0 0.0
    %643 = vmatpush1.msra.mxu0 0.0
    %644 = vmatprep.subr.mxu0 0.0
    %645 = vmatpush1.msra.mxu0 0.0
    %646 = vmatprep.subr.mxu0 0.0
    %647 = vmatpush1.msra.mxu0 0.0
    %648 = vmatprep.subr.mxu0 0.0
    %649 = vmatpush1.msra.mxu0 0.0
    %650 = vmatprep.subr.mxu0 0.0
    %651 = vmatpush1.msra.mxu0 0.0
    %652 = vmatprep.subr.mxu0 0.0
    %653 = vmatpush1.msra.mxu0 0.0
    %654 = vmatprep.subr.mxu0 0.0
    %655 = vmatpush1.msra.mxu0 0.0
    %656 = vmatprep.subr.mxu0 0.0
    %657 = vmatpush1.msra.mxu0 0.0
    %658 = vmatprep.subr.mxu0 0.0
    %659 = vmatpush1.msra.mxu0 0.0
    %660 = vmatprep.subr.mxu0 0.0
    %661 = vmatpush1.msra.mxu0 0.0
    %662 = vmatprep.subr.mxu0 0.0
    %663 = vmatpush1.msra.mxu0 0.0
    %664 = vmatprep.subr.mxu0 0.0
    %665 = vmatpush1.msra.mxu0 0.0
    %666 = vmatprep.subr.mxu0 0.0
    %667 = vmatpush1.msra.mxu0 0.0
    %668 = vmatprep.subr.mxu0 0.0
    %669 = vmatpush1.msra.mxu0 0.0
    %670 = vmatprep.subr.mxu0 0.0
    %671 = vmatpush1.msra.mxu0 0.0
    %672 = vmatprep.subr.mxu0 0.0
    %673 = vmatpush1.msra.mxu0 0.0
    %674 = vmatprep.subr.mxu0 0.0
    %675 = vmatpush1.msra.mxu0 0.0
    %676 = vmatprep.mubr.f32.mxu0 0.0
    %677 = vmatmul.mubr.f32.gmra.mrb[0].mxu0 %v607
    %v678 = vpop.f32.mrb[0].mxu0
    %v679 = vadd.f32 0.0, %v678
    %v680 = vpop.f32.mrb[0].mxu0
    %681 = vmatprep.mubr.f32.mxu0 0.0
    %682 = vmatmul.mubr.f32.gmra.mrb[0].mxu0 %v610
    %v683 = vpop.f32.mrb[0].mxu0
    %v684 = vadd.f32 0.0, %v683
    %v685 = vpop.f32.mrb[0].mxu0
    %686 = vdwg.mxu0
    %v688 = vlaneseq
    %v689 = vshrl.u32 %v688, 7
    %v690 = vsub.s32 0, %v689
    %v691 = vrot.slane %v25, %v690
    %697 = vrot.lane.b32.xlu0 %v27, 32
    %v698 = vpop.permute.xlu0 %697
    %699 = vrot.lane.b32.xlu0 %v28, 32
    %v700 = vpop.permute.xlu0 %699
    %701 = vrot.lane.b32.xlu0 %v29, 32
    %v702 = vpop.permute.xlu0 %701
    %703 = vrot.lane.b32.xlu0 %v30, 32
    %v704 = vpop.permute.xlu0 %703
    %v710 = vsel %vm47, %v679, 0
    %v713 = vsel %vm47, %v684, 0
    %715 = vmatprep.subr.mxu0 0.0
    %716 = vmatpush1.msra.mxu0 %v698
    %717 = vmatprep.subr.mxu0 0.0
    %718 = vmatpush1.msra.mxu0 %v700
    %719 = vmatprep.subr.mxu0 0.0
    %720 = vmatpush1.msra.mxu0 %v702
    %721 = vmatprep.subr.mxu0 0.0
    %722 = vmatpush1.msra.mxu0 %v704
    %723 = vmatprep.subr.mxu0 0.0
    %724 = vmatpush1.msra.mxu0 0.0
    %725 = vmatprep.subr.mxu0 0.0
    %726 = vmatpush1.msra.mxu0 0.0
    %727 = vmatprep.subr.mxu0 0.0
    %728 = vmatpush1.msra.mxu0 0.0
    %729 = vmatprep.subr.mxu0 0.0
    %730 = vmatpush1.msra.mxu0 0.0
    %731 = vmatprep.subr.mxu0 0.0
    %732 = vmatpush1.msra.mxu0 0.0
    %733 = vmatprep.subr.mxu0 0.0
    %734 = vmatpush1.msra.mxu0 0.0
    %735 = vmatprep.subr.mxu0 0.0
    %736 = vmatpush1.msra.mxu0 0.0
    %737 = vmatprep.subr.mxu0 0.0
    %738 = vmatpush1.msra.mxu0 0.0
    %739 = vmatprep.subr.mxu0 0.0
    %740 = vmatpush1.msra.mxu0 0.0
    %741 = vmatprep.subr.mxu0 0.0
    %742 = vmatpush1.msra.mxu0 0.0
    %743 = vmatprep.subr.mxu0 0.0
    %744 = vmatpush1.msra.mxu0 0.0
    %745 = vmatprep.subr.mxu0 0.0
    %746 = vmatpush1.msra.mxu0 0.0
    %747 = vmatprep.subr.mxu0 0.0
    %748 = vmatpush1.msra.mxu0 0.0
    %749 = vmatprep.subr.mxu0 0.0
    %750 = vmatpush1.msra.mxu0 0.0
    %751 = vmatprep.subr.mxu0 0.0
    %752 = vmatpush1.msra.mxu0 0.0
    %753 = vmatprep.subr.mxu0 0.0
    %754 = vmatpush1.msra.mxu0 0.0
    %755 = vmatprep.subr.mxu0 0.0
    %756 = vmatpush1.msra.mxu0 0.0
    %757 = vmatprep.subr.mxu0 0.0
    %758 = vmatpush1.msra.mxu0 0.0
    %759 = vmatprep.subr.mxu0 0.0
    %760 = vmatpush1.msra.mxu0 0.0
    %761 = vmatprep.subr.mxu0 0.0
    %762 = vmatpush1.msra.mxu0 0.0
    %763 = vmatprep.subr.mxu0 0.0
    %764 = vmatpush1.msra.mxu0 0.0
    %765 = vmatprep.subr.mxu0 0.0
    %766 = vmatpush1.msra.mxu0 0.0
    %767 = vmatprep.subr.mxu0 0.0
    %768 = vmatpush1.msra.mxu0 0.0
    %769 = vmatprep.subr.mxu0 0.0
    %770 = vmatpush1.msra.mxu0 0.0
    %771 = vmatprep.subr.mxu0 0.0
    %772 = vmatpush1.msra.mxu0 0.0
    %773 = vmatprep.subr.mxu0 0.0
    %774 = vmatpush1.msra.mxu0 0.0
    %775 = vmatprep.subr.mxu0 0.0
    %776 = vmatpush1.msra.mxu0 0.0
    %777 = vmatprep.subr.mxu0 0.0
    %778 = vmatpush1.msra.mxu0 0.0
    %779 = vmatprep.mubr.f32.mxu0 0.0
    %780 = vmatmul.mubr.f32.gmra.mrb[0].mxu0 %v710
    %v781 = vpop.f32.mrb[0].mxu0
    %v782 = vadd.f32 %v691, %v781
    %v783 = vpop.f32.mrb[0].mxu0
    %784 = vmatprep.mubr.f32.mxu0 0.0
    %785 = vmatmul.mubr.f32.gmra.mrb[0].mxu0 %v713
    %v786 = vpop.f32.mrb[0].mxu0
    %v787 = vadd.f32 %v691, %v786
    %v788 = vpop.f32.mrb[0].mxu0
    %789 = vdwg.mxu0
    %v790 = vadd.f32 %v782, %v45
    %v791 = vadd.f32 %v787, %v46
    %v792 = vsel %vm47, %v790, 0.0
    %793 = vadd.xlane.f32.xlu0 %v792
    %v794 = vpop.xlane.xlu0 %793
    %v795 = vsel %vm47, %v791, 0.0
    %796 = vadd.xlane.f32.xlu0 %v795
    %v797 = vpop.xlane.xlu0 %796
    %v798 = vmul.f32 %v794, %v54
    %v799 = vmul.f32 %v797, %v54
    %v800 = vsub.f32 %v790, %v798
    %v801 = vsub.f32 %v791, %v799
    %v802 = vmul.f32 %v800, %v800
    %v803 = vmul.f32 %v801, %v801
    %v804 = vsel %vm47, %v802, 0.0
    %805 = vadd.xlane.f32.xlu0 %v804
    %v806 = vpop.xlane.xlu0 %805
    %v807 = vsel %vm47, %v803, 0.0
    %808 = vadd.xlane.f32.xlu0 %v807
    %v809 = vpop.xlane.xlu0 %808
    %v810 = vmul.f32 %v806, %v54
    %v811 = vmul.f32 %v809, %v54
    %v812 = vadd.f32 %v810, 1e-05
    %v813 = vadd.f32 %v811, 1e-05
    %v814 = vrsqrt.pop %v812
    %v815 = vrsqrt.pop %v813
    %v816 = vmul.f32 %v800, %v814
    %v817 = vmul.f32 %v801, %v815
    %820 = vrot.lane.b32.xlu0 %v816, 64
    %v821 = vpop.permute.xlu0 %820
    %822 = vrot.lane.b32.xlu0 %v817, 64
    %v823 = vpop.permute.xlu0 %822
    %v826 = vmul.f32 %v79, %v821
    %v827 = vmul.f32 %v79, %v823
    %v828 = vadd.f32 %v826, %v84
    %v829 = vadd.f32 %v827, %v84
    %v831 = vlaneseq
    %v832 = vshrl.u32 %v831, 7
    %v833 = vsub.s32 0, %v832
    %v834 = vrot.slane %v26, %v833
    %v835 = vlaneseq
    %v836 = vshrl.u32 %v835, 7
    %v837 = vsub.s32 1, %v836
    %v838 = vrot.slane %v26, %v837
    %841 = vrot.lane.b32.xlu0 %v828, 64
    %v842 = vpop.permute.xlu0 %841
    %843 = vrot.lane.b32.xlu0 %v829, 64
    %v844 = vpop.permute.xlu0 %843
    %845 = vrot.lane.b32.xlu0 %v834, 64
    %v846 = vpop.permute.xlu0 %845
    %847 = vrot.lane.b32.xlu0 %v838, 64
    %v848 = vpop.permute.xlu0 %847
    %v849 = vsel %vm356, %v846, %v848
    %v851 = vsel %vm47, %v842, 0
    %v853 = vsel %vm47, %v844, 0
    %855 = vmatprep.subr.mxu0 0.0
    %856 = vmatpush1.msra.mxu0 %v31
    %857 = vmatprep.subr.mxu0 0.0
    %858 = vmatpush1.msra.mxu0 %v32
    %859 = vmatprep.subr.mxu0 0.0
    %860 = vmatpush1.msra.mxu0 %v33
    %861 = vmatprep.subr.mxu0 0.0
    %862 = vmatpush1.msra.mxu0 %v34
    %863 = vmatprep.subr.mxu0 0.0
    %864 = vmatpush1.msra.mxu0 0.0
    %865 = vmatprep.subr.mxu0 0.0
    %866 = vmatpush1.msra.mxu0 0.0
    %867 = vmatprep.subr.mxu0 0.0
    %868 = vmatpush1.msra.mxu0 0.0
    %869 = vmatprep.subr.mxu0 0.0
    %870 = vmatpush1.msra.mxu0 0.0
    %871 = vmatprep.subr.mxu0 0.0
    %872 = vmatpush1.msra.mxu0 0.0
    %873 = vmatprep.subr.mxu0 0.0
    %874 = vmatpush1.msra.mxu0 0.0
    %875 = vmatprep.subr.mxu0 0.0
    %876 = vmatpush1.msra.mxu0 0.0
    %877 = vmatprep.subr.mxu0 0.0
    %878 = vmatpush1.msra.mxu0 0.0
    %879 = vmatprep.subr.mxu0 0.0
    %880 = vmatpush1.msra.mxu0 0.0
    %881 = vmatprep.subr.mxu0 0.0
    %882 = vmatpush1.msra.mxu0 0.0
    %883 = vmatprep.subr.mxu0 0.0
    %884 = vmatpush1.msra.mxu0 0.0
    %885 = vmatprep.subr.mxu0 0.0
    %886 = vmatpush1.msra.mxu0 0.0
    %887 = vmatprep.subr.mxu0 0.0
    %888 = vmatpush1.msra.mxu0 0.0
    %889 = vmatprep.subr.mxu0 0.0
    %890 = vmatpush1.msra.mxu0 0.0
    %891 = vmatprep.subr.mxu0 0.0
    %892 = vmatpush1.msra.mxu0 0.0
    %893 = vmatprep.subr.mxu0 0.0
    %894 = vmatpush1.msra.mxu0 0.0
    %895 = vmatprep.subr.mxu0 0.0
    %896 = vmatpush1.msra.mxu0 0.0
    %897 = vmatprep.subr.mxu0 0.0
    %898 = vmatpush1.msra.mxu0 0.0
    %899 = vmatprep.subr.mxu0 0.0
    %900 = vmatpush1.msra.mxu0 0.0
    %901 = vmatprep.subr.mxu0 0.0
    %902 = vmatpush1.msra.mxu0 0.0
    %903 = vmatprep.subr.mxu0 0.0
    %904 = vmatpush1.msra.mxu0 0.0
    %905 = vmatprep.subr.mxu0 0.0
    %906 = vmatpush1.msra.mxu0 0.0
    %907 = vmatprep.subr.mxu0 0.0
    %908 = vmatpush1.msra.mxu0 0.0
    %909 = vmatprep.subr.mxu0 0.0
    %910 = vmatpush1.msra.mxu0 0.0
    %911 = vmatprep.subr.mxu0 0.0
    %912 = vmatpush1.msra.mxu0 0.0
    %913 = vmatprep.subr.mxu0 0.0
    %914 = vmatpush1.msra.mxu0 0.0
    %915 = vmatprep.subr.mxu0 0.0
    %916 = vmatpush1.msra.mxu0 0.0
    %917 = vmatprep.subr.mxu0 0.0
    %918 = vmatpush1.msra.mxu0 0.0
    %919 = vmatprep.mubr.f32.mxu0 0.0
    %920 = vmatmul.mubr.f32.gmra.mrb[0].mxu0 %v851
    %v921 = vpop.f32.mrb[0].mxu0
    %v922 = vadd.f32 %v849, %v921
    %v923 = vpop.f32.mrb[0].mxu0
    %924 = vmatprep.mubr.f32.mxu0 0.0
    %925 = vmatmul.mubr.f32.gmra.mrb[0].mxu0 %v853
    %v926 = vpop.f32.mrb[0].mxu0
    %v927 = vadd.f32 %v849, %v926
    %v928 = vpop.f32.mrb[0].mxu0
    %929 = vdwg.mxu0
    %v930 = vmul.f32 %v922, 0.5
    %v931 = vmul.f32 %v927, 0.5
    %v932 = vmul.f32 %v922, 0.044715
    %v933 = vmul.f32 %v927, 0.044715
    %v934 = vmul.f32 %v932, %v922
    %v935 = vmul.f32 %v933, %v927
    %v936 = vmul.f32 %v934, %v922
    %v937 = vmul.f32 %v935, %v927
    %v938 = vadd.f32 %v922, %v936
    %v939 = vadd.f32 %v927, %v937
    %v940 = vmul.f32 %v938, 0.7978846
    %v941 = vmul.f32 %v939, 0.7978846
    %v942 = vtanh.pop %v940
    %v943 = vtanh.pop %v941
    %v944 = vadd.f32 %v942, 1.0
    %v945 = vadd.f32 %v943, 1.0
    %v946 = vmul.f32 %v930, %v944
    %v947 = vmul.f32 %v931, %v945
    %v948 = vld [vmem:[%s2] sm:$0xff]
    %v949 = vld [vmem:[%s2 + $0x8] sm:$0xff]
    %v950 = vld [vmem:[%s2 + $0x10] sm:$0xff]
    %v951 = vld [vmem:[%s2 + $0x18] sm:$0xff]
    %v952 = vld [vmem:[%s2 + $0x20] sm:$0xff]
    %v953 = vld [vmem:[%s2 + $0x28] sm:$0xff]
    %v954 = vld [vmem:[%s2 + $0x30] sm:$0xff]
    %v955 = vld [vmem:[%s2 + $0x38] sm:$0xff]
    %v956 = vld [vmem:[%s2 + $0x40] sm:$0xff]
    %v957 = vld [vmem:[%s2 + $0x48] sm:$0xff]
    %v958 = vld [vmem:[%s2 + $0x50] sm:$0xff]
    %v959 = vld [vmem:[%s2 + $0x58] sm:$0xff]
    %v960 = vld [vmem:[%s2 + $0x60] sm:$0xff]
    %v961 = vld [vmem:[%s2 + $0x68] sm:$0xff]
    %v962 = vld [vmem:[%s2 + $0x70] sm:$0xff]
    %v963 = vld [vmem:[%s2 + $0x78] sm:$0xff]
    %964 = vrot.lane.b32.xlu0 %v691, 96
    %v965 = vpop.permute.xlu0 %964
    %967 = vmatprep.subr.mxu0 0.0
    %968 = vmatpush1.msra.mxu0 %v948
    %969 = vmatprep.subr.mxu0 0.0
    %970 = vmatpush1.msra.mxu0 %v949
    %971 = vmatprep.subr.mxu0 0.0
    %972 = vmatpush1.msra.mxu0 %v950
    %973 = vmatprep.subr.mxu0 0.0
    %974 = vmatpush1.msra.mxu0 %v951
    %975 = vmatprep.subr.mxu0 0.0
    %976 = vmatpush1.msra.mxu0 %v952
    %977 = vmatprep.subr.mxu0 0.0
    %978 = vmatpush1.msra.mxu0 %v953
    %979 = vmatprep.subr.mxu0 0.0
    %980 = vmatpush1.msra.mxu0 %v954
    %981 = vmatprep.subr.mxu0 0.0
    %982 = vmatpush1.msra.mxu0 %v955
    %983 = vmatprep.subr.mxu0 0.0
    %984 = vmatpush1.msra.mxu0 %v956
    %985 = vmatprep.subr.mxu0 0.0
    %986 = vmatpush1.msra.mxu0 %v957
    %987 = vmatprep.subr.mxu0 0.0
    %988 = vmatpush1.msra.mxu0 %v958
    %989 = vmatprep.subr.mxu0 0.0
    %990 = vmatpush1.msra.mxu0 %v959
    %991 = vmatprep.subr.mxu0 0.0
    %992 = vmatpush1.msra.mxu0 %v960
    %993 = vmatprep.subr.mxu0 0.0
    %994 = vmatpush1.msra.mxu0 %v961
    %995 = vmatprep.subr.mxu0 0.0
    %996 = vmatpush1.msra.mxu0 %v962
    %997 = vmatprep.subr.mxu0 0.0
    %998 = vmatpush1.msra.mxu0 %v963
    %999 = vmatprep.subr.mxu0 0.0
    %1000 = vmatpush1.msra.mxu0 0.0
    %1001 = vmatprep.subr.mxu0 0.0
    %1002 = vmatpush1.msra.mxu0 0.0
    %1003 = vmatprep.subr.mxu0 0.0
    %1004 = vmatpush1.msra.mxu0 0.0
    %1005 = vmatprep.subr.mxu0 0.0
    %1006 = vmatpush1.msra.mxu0 0.0
    %1007 = vmatprep.subr.mxu0 0.0
    %1008 = vmatpush1.msra.mxu0 0.0
    %1009 = vmatprep.subr.mxu0 0.0
    %1010 = vmatpush1.msra.mxu0 0.0
    %1011 = vmatprep.subr.mxu0 0.0
    %1012 = vmatpush1.msra.mxu0 0.0
    %1013 = vmatprep.subr.mxu0 0.0
    %1014 = vmatpush1.msra.mxu0 0.0
    %1015 = vmatprep.subr.mxu0 0.0
    %1016 = vmatpush1.msra.mxu0 0.0
    %1017 = vmatprep.subr.mxu0 0.0
    %1018 = vmatpush1.msra.mxu0 0.0
    %1019 = vmatprep.subr.mxu0 0.0
    %1020 = vmatpush1.msra.mxu0 0.0
    %1021 = vmatprep.subr.mxu0 0.0
    %1022 = vmatpush1.msra.mxu0 0.0
    %1023 = vmatprep.subr.mxu0 0.0
    %1024 = vmatpush1.msra.mxu0 0.0
    %1025 = vmatprep.subr.mxu0 0.0
    %1026 = vmatpush1.msra.mxu0 0.0
    %1027 = vmatprep.subr.mxu0 0.0
    %1028 = vmatpush1.msra.mxu0 0.0
    %1029 = vmatprep.subr.mxu0 0.0
    %1030 = vmatpush1.msra.mxu0 0.0
    %1031 = vmatprep.mubr.f32.mxu0 0.0
    %1032 = vmatmul.mubr.f32.gmra.mrb[0].mxu0 %v946
    %v1033 = vpop.f32.mrb[0].mxu0
    %v1034 = vadd.f32 %v965, %v1033
    %v1035 = vpop.f32.mrb[0].mxu0
    %1036 = vmatprep.mubr.f32.mxu0 0.0
    %1037 = vmatmul.mubr.f32.gmra.mrb[0].mxu0 %v947
    %v1038 = vpop.f32.mrb[0].mxu0
    %v1039 = vadd.f32 %v965, %v1038
    %v1040 = vpop.f32.mrb[0].mxu0
    %1041 = vdwg.mxu0
    %v1042 = vadd.f32 %v1034, %v790
    %v1043 = vadd.f32 %v1039, %v791
    %1044 = vst.msk [vmem:[#allocation2] sm:$0xff] %vm47, %v1042
    %1045 = vst.msk [vmem:[#allocation2 + $0x8] sm:$0xff] %vm47, %v1043
    // Predicated region
    $region26: #{tpu_custom_call.1} parent=1 // pred_check
      _
    $region27: #{tpu_custom_call.1} parent=1 // pred_check_branch
      %1047 = sbr.rel (0) target = $region29
    $region28: #{tpu_custom_call.1} parent=1 // pred_region
      %s1049 = ssub.s32 256, 256
      %1050 = vsyncadd [#allocation3], %s1049
      %s1051 = sshll.u32 [#allocation2], 4
      %s1052 = int_to_ptr.vmem [resolvable:$true] %s1051
      %1057 = dma.vmem_to_hbm [thread:$0]  %s1052, 256, %s6, [#allocation3], 128, 128, 8
    $region29: #{tpu_custom_call.1} parent=1 // pred_fallthru
      _
    // Predicated region
    $region30: #{tpu_custom_call.1} parent=1 // pred_check
      _
    $region31: #{tpu_custom_call.1} parent=1 // pred_check_branch
      %1059 = sbr.rel (0) target = $region33
    $region32: #{tpu_custom_call.1} parent=1 // pred_region
      %1060 = dma.done [#allocation3], 256
    $region33: #{tpu_custom_call.1} parent=1 // pred_fallthru
      _
    %1061 = vsyncpa [#allocation3], 1

</llo_original>
